<compile_context>
chip_gen: v7x
topology: tpu7x:2x2x1
jax: 0.10.0
libtpu: 0.0.40
codegen_flags: <defaults>
</compile_context>

<pallas_src>
import jax
import jax.numpy as jnp
from jax.experimental import pallas as pl
from jax.experimental.pallas import tpu as pltpu

COEFF = 12.0
LANE = 128
SUBLANE = 8


def _softgate_kernel(x_ref, o_ref):
    # 12*sigmoid(x) == 6*tanh(x/2) + 6 : one EUP op (tanh) + two VPU ops,
    # computed in the input's native dtype (Mosaic upcasts internally on v5e).
    x = x_ref[...]
    half = jnp.asarray(0.5, dtype=x.dtype)
    six = jnp.asarray(COEFF * 0.5, dtype=x.dtype)
    o_ref[...] = (jnp.tanh(x * half) * six + six).astype(o_ref.dtype)


def soft_gate(x):
    """Applies sigmoid(x) * 12.0 elementwise. Works for any shape (NCHW etc.)."""
    orig_shape = x.shape
    dtype = x.dtype
    n_elem = x.size
    itemsize = jnp.dtype(dtype).itemsize

    # Sub-32-bit dtypes pack along sublanes: keep block rows a multiple of the
    # native sublane tile (8 for f32, 16 for bf16, 32 for int8/fp8).
    sub_mult = max(SUBLANE, 32 // itemsize)

    # ~4 MiB per block: hits the HBM roofline knee on v6e/v7x; with the
    # explicit 32 MiB scoped-VMEM limit below, 2 bufs x (in + out) = 16 MiB is
    # also safe on v5e (whose default scoped limit is only 16 MiB).
    target_bytes = 4 * 1024 * 1024

    cost = pl.CostEstimate(
        flops=2 * n_elem,                 # the *6 and +6
        transcendentals=n_elem,           # tanh
        bytes_accessed=2 * n_elem * itemsize,
    )
    cparams = pltpu.CompilerParams(
        dimension_semantics=("parallel",),
        vmem_limit_bytes=32 * 1024 * 1024,
    )

    if n_elem % LANE == 0:
        # Common case (every typical NCHW feature map): lane-dense (rows, 128)
        # slab via a free reshape; each block is one contiguous DMA, all
        # stores are unmasked vst.
        rows = n_elem // LANE
        target_rows = max(
            sub_mult,
            (target_bytes // (LANE * itemsize)) // sub_mult * sub_mult,
        )
        if rows <= target_rows:
            block_rows = rows           # single block == full dim (always legal)
        else:
            block_rows = target_rows    # multiple of sublane tile; tail masked
        grid = (pl.cdiv(rows, block_rows),)

        out2d = pl.pallas_call(
            _softgate_kernel,
            out_shape=jax.ShapeDtypeStruct((rows, LANE), dtype),
            grid_spec=pltpu.PrefetchScalarGridSpec(
                num_scalar_prefetch=0,
                grid=grid,
                in_specs=[pl.BlockSpec((block_rows, LANE), lambda i: (i, 0))],
                out_specs=pl.BlockSpec((block_rows, LANE), lambda i: (i, 0)),
            ),
            compiler_params=cparams,
            cost_estimate=cost,
        )(x.reshape(rows, LANE))
        return out2d.reshape(orig_shape)

    # Ragged case (n_elem % 128 != 0): feed the unpadded flat 1-D array and let
    # Pallas mask the ragged final block -- no jnp.pad (full HBM copy) and no
    # trailing slice (another copy).  Blocks kept modest since 1-D vreg packing
    # is laxer than the lane-dense 2-D slab.
    flat = x.reshape(n_elem)
    chunk = sub_mult * LANE
    rag_target = max(chunk, ((512 * 1024) // itemsize) // chunk * chunk)
    if n_elem <= rag_target:
        block_elems = n_elem            # single block == full dim (always legal)
    else:
        block_elems = rag_target        # multiple of 128; ragged tail masked
    grid = (pl.cdiv(n_elem, block_elems),)

    out_flat = pl.pallas_call(
        _softgate_kernel,
        out_shape=jax.ShapeDtypeStruct((n_elem,), dtype),
        grid_spec=pltpu.PrefetchScalarGridSpec(
            num_scalar_prefetch=0,
            grid=grid,
            in_specs=[pl.BlockSpec((block_elems,), lambda i: (i,))],
            out_specs=pl.BlockSpec((block_elems,), lambda i: (i,)),
        ),
        compiler_params=cparams,
        cost_estimate=cost,
    )(flat)
    return out_flat.reshape(orig_shape)


if __name__ == "__main__":
    key = jax.random.PRNGKey(0)
    # NCHW input, consistent with PyTorch conv-style feature maps.
    x = jax.random.normal(key, (2, 4, 16, 16), dtype=jnp.float32)
    out = jax.block_until_ready(soft_gate(x))
    ref = jax.nn.sigmoid(x) * COEFF
    assert out.shape == x.shape
    assert out.dtype == x.dtype
    assert jnp.allclose(out, ref, atol=1e-5, rtol=1e-5)

    # Ragged path (element count not a multiple of 128): no pad/slice copies.
    x2 = jax.random.normal(jax.random.PRNGKey(1), (3, 5, 7), dtype=jnp.float32)
    out2 = jax.block_until_ready(soft_gate(x2))
    ref2 = jax.nn.sigmoid(x2) * COEFF
    assert out2.shape == x2.shape
    assert jnp.allclose(out2, ref2, atol=1e-5, rtol=1e-5)

    print("KERNEL_OK")
</pallas_src>

<mosaic_0001>
module attributes {stable_mosaic.version = 11 : i64} {
  func.func @_softgate_kernel(%arg0: i32, %arg1: memref<16x128xf32, #tpu.memory_space<vmem>>, %arg2: memref<16x128xf32, #tpu.memory_space<vmem>>) attributes {dimension_semantics = [#tpu.dimension_semantics<parallel>], iteration_bounds = array<i64: 1>, scalar_prefetch = 0 : i64, scratch_operands = 0 : i64, tpu.core_type = #tpu.core_type<tc>, window_params = [{transform_indices = @transform_0, window_bounds = array<i64: 16, 128>}, {transform_indices = @transform_1, window_bounds = array<i64: 16, 128>}]} {
    %c0 = arith.constant 0 : index
    %c0_0 = arith.constant 0 : index
    %0 = vector.load %arg1[%c0, %c0_0] : memref<16x128xf32, #tpu.memory_space<vmem>>, vector<16x128xf32>
    %cst = arith.constant 5.000000e-01 : f32
    %1 = vector.broadcast %cst : f32 to vector<16x128xf32>
    %2 = arith.mulf %0, %1 : vector<16x128xf32>
    %3 = math.tanh %2 : vector<16x128xf32>
    %cst_1 = arith.constant 6.000000e+00 : f32
    %4 = vector.broadcast %cst_1 : f32 to vector<16x128xf32>
    %5 = arith.mulf %3, %4 : vector<16x128xf32>
    %cst_2 = arith.constant 6.000000e+00 : f32
    %6 = vector.broadcast %cst_2 : f32 to vector<16x128xf32>
    %7 = arith.addf %5, %6 : vector<16x128xf32>
    %c0_3 = arith.constant 0 : index
    %c0_4 = arith.constant 0 : index
    %8 = vector.load %arg2[%c0_3, %c0_4] : memref<16x128xf32, #tpu.memory_space<vmem>>, vector<16x128xf32>
    tpu.vector_store %arg2[%c0_3, %c0_4], %7 {strides = array<i32>} : memref<16x128xf32, #tpu.memory_space<vmem>>, vector<16x128xf32>,
    return
  }
  func.func @transform_0(%arg0: i32) -> (i32, i32) {
    %c0_i32 = arith.constant 0 : i32
    %c0_i32_0 = arith.constant 0 : i32
    return %arg0, %c0_i32 : i32, i32
  }
  func.func @transform_1(%arg0: i32) -> (i32, i32) {
    %c0_i32 = arith.constant 0 : i32
    %c0_i32_0 = arith.constant 0 : i32
    return %arg0, %c0_i32 : i32, i32
  }
}

</mosaic_0001>

<llo_original>
// kernel: tpu_custom_call.1
$region0: #{tpu_custom_call.1}
  #allocation0 [shape = 'u32[]', space=smem, size = 0x4, offset = 0x4, fixed_abs, tag = 'smem constant byte address 0x4 - core index']
  #allocation1 [shape = 'u32[144,128]{1,0:T(1,128)}', space=vmem, size = 0x12000, scoped, tag = 'internal scratch']
  %s0 = inlined_call_operand.hbm [shape: f32[16,128], index: 0, kind: input, shape index: {}]
  %s1 = inlined_call_operand.hbm [shape: f32[16,128], index: 1, kind: output, shape index: {}]
  %s2 = sld [smem:[#allocation0]]
  $region18: #{tpu_custom_call.1} parent=0
    _
  %s4 = ssub.s32 1, %s2
  %s5 = scalar_select 0, %s4, %s2
  $region1: #{tpu_custom_call.1} parent=0
    #allocation2 [shape = 'u8[8192]{0}', space=vmem, size = 0x2000, scoped, tag = 'input window, operand 0, single buffered']
    #allocation3 [shape = 's32[1]{0}', space=sflag, size = 0x4, scoped, tag = 'scoped memory for tpu_custom_call.1']
    #allocation4 [shape = 's32[1]{0}', space=sflag, size = 0x4, scoped, tag = 'scoped memory for tpu_custom_call.1']
    #allocation5 [shape = 'u8[8192]{0}', space=vmem, size = 0x2000, scoped, tag = 'output window, operand 0, single buffered']
    %6 = vsyncpa [#allocation3], 0
    %7 = vsyncpa [#allocation4], 0
    // Predicated region
    $region2: #{tpu_custom_call.1} parent=1 // pred_check
      _
    $region3: #{tpu_custom_call.1} parent=1 // pred_check_branch
      %9 = sbr.rel (0) target = $region5
    $region4: #{tpu_custom_call.1} parent=1 // pred_region
      %s11 = ssub.s32 256, 256
      %12 = vsyncadd [#allocation3], %s11
      %s13 = sshll.u32 [#allocation2], 4
      %s14 = int_to_ptr.vmem [resolvable:$true] %s13
      %19 = dma.hbm_to_vmem [thread:$0]  %s0, 256, %s14, [#allocation3], 128, 128, 8
    $region5: #{tpu_custom_call.1} parent=1 // pred_fallthru
      _
    // Predicated region
    $region6: #{tpu_custom_call.1} parent=1 // pred_check
      _
    $region7: #{tpu_custom_call.1} parent=1 // pred_check_branch
      %21 = sbr.rel (0) target = $region9
    $region8: #{tpu_custom_call.1} parent=1 // pred_region
      %22 = dma.done [#allocation3], 256
    $region9: #{tpu_custom_call.1} parent=1 // pred_fallthru
      _
    %v23 = vld [vmem:[#allocation2] sm:$0xff]
    %v24 = vld [vmem:[#allocation2 + $0x8] sm:$0xff]
    %v25 = vmul.f32 %v23, 0.5
    %v26 = vmul.f32 %v24, 0.5
    %v27 = vtanh.pop %v25
    %v28 = vtanh.pop %v26
    %v29 = vmul.f32 %v27, 6.0
    %v30 = vmul.f32 %v28, 6.0
    %v31 = vadd.f32 %v29, 6.0
    %v32 = vadd.f32 %v30, 6.0
    %33 = vst [vmem:[#allocation5] sm:$0xff] %v31
    %34 = vst [vmem:[#allocation5 + $0x8] sm:$0xff] %v32
    // Predicated region
    $region10: #{tpu_custom_call.1} parent=1 // pred_check
      _
    $region11: #{tpu_custom_call.1} parent=1 // pred_check_branch
      %36 = sbr.rel (0) target = $region13
    $region12: #{tpu_custom_call.1} parent=1 // pred_region
      %s38 = ssub.s32 256, 256
      %39 = vsyncadd [#allocation4], %s38
      %s40 = sshll.u32 [#allocation5], 4
      %s41 = int_to_ptr.vmem [resolvable:$true] %s40
      %46 = dma.vmem_to_hbm [thread:$0]  %s41, 256, %s1, [#allocation4], 128, 128, 8
    $region13: #{tpu_custom_call.1} parent=1 // pred_fallthru
      _
    // Predicated region
    $region14: #{tpu_custom_call.1} parent=1 // pred_check
      _
    $region15: #{tpu_custom_call.1} parent=1 // pred_check_branch
      %48 = sbr.rel (0) target = $region17
    $region16: #{tpu_custom_call.1} parent=1 // pred_region
      %49 = dma.done [#allocation4], 256
    $region17: #{tpu_custom_call.1} parent=1 // pred_fallthru
      _
    %50 = vsyncpa [#allocation3], 1
    %51 = vsyncpa [#allocation4], 1

</llo_original>
